<compile_context>
chip_gen: v7x
topology: tpu7x:2x2x1
jax: 0.10.0
libtpu: 0.0.40
codegen_flags: <defaults>
</compile_context>

<pallas_src>
import functools

import jax
import jax.numpy as jnp
from jax.experimental import pallas as pl
from jax.experimental.pallas import tpu as pltpu


MAX_TILE_B = 65536   # double-buffered in+out footprint ~= 128*tile_b bytes ~= 8 MiB
MIN_SPLIT_B = 32768  # beyond this, force >= 2 grid steps (feeds both v7x TensorCores)


def _round_up(n, m):
    return ((n + m - 1) // m) * m


def _choose_tiling(batch, max_tile_b):
    """Pick (tile_b, b_pad, num_tiles) with tile_b a multiple of 128."""
    b128 = _round_up(max(batch, 1), 128)
    num_tiles = pl.cdiv(b128, max_tile_b)
    if num_tiles == 1 and b128 >= MIN_SPLIT_B:
        num_tiles = 2  # keep both v7x TensorCores issuing DMAs
    tile_b = _round_up(pl.cdiv(b128, num_tiles), 128)
    b_pad = tile_b * num_tiles
    return tile_b, b_pad, num_tiles


def linear_kernel(x_ref, w_ref, b_ref, o_ref):
    """Lane-dense VPU/XLU linear layer (no MXU).

    x_ref: (IN, TILE_B)  VMEM  -- batch on the 128-lane axis
    w_ref: (IN, OUT)     VMEM  -- weight column(s), broadcast along lanes
    b_ref: (OUT,)        SMEM  -- scalar bias
    o_ref: (OUT, TILE_B) VMEM  -- lane-dense output (unmasked stores)
    """
    x = x_ref[...].astype(jnp.float32)                         # (IN, TILE_B)
    out_features = o_ref.shape[0]
    for o in range(out_features):                              # OUT == 1: fully unrolled
        w_col = w_ref[:, o:o + 1].astype(jnp.float32)          # (IN, 1)
        acc = (w_col * x).sum(axis=0, keepdims=True)           # VPU mul + XLU sublane reduce
        o_ref[o:o + 1, :] = (acc + b_ref[o]).astype(o_ref.dtype)


@functools.partial(jax.jit, static_argnames=("max_tile_b",))
def regression_model_forward(x, weight, bias, max_tile_b=MAX_TILE_B):
    """x: (B, IN) f32, weight: (OUT, IN) f32, bias: (OUT,) f32 -> (B, OUT) f32."""
    B, IN = x.shape
    OUT = weight.shape[0]
    tile_b, b_pad, num_tiles = _choose_tiling(B, max_tile_b)

    # Lane-dense layout: batch on the 128-lane axis.
    # TODO(synk): this transpose is an extra XLA pass over x; produce/store the
    # activations in (IN, B) layout upstream (or fuse into the producer) to remove it.
    xt = x.T                                               # (IN, B)
    if b_pad != B:
        xt = jnp.pad(xt, ((0, 0), (0, b_pad - B)))         # only the small ragged tail

    w_cols = weight.T.astype(jnp.float32)                  # (IN, OUT) column vector(s)

    cost = pl.CostEstimate(
        flops=2 * b_pad * IN * OUT,
        transcendentals=0,
        bytes_accessed=4 * (b_pad * IN + b_pad * OUT + IN * OUT + OUT),
    )

    yt = pl.pallas_call(
        linear_kernel,
        out_shape=jax.ShapeDtypeStruct((OUT, b_pad), x.dtype),
        grid=(num_tiles,),
        in_specs=[
            pl.BlockSpec((IN, tile_b), lambda i: (0, i)),       # streamed activations
            pl.BlockSpec((IN, OUT), lambda i: (0, 0)),          # resident weight column(s)
            pl.BlockSpec(memory_space=pltpu.MemorySpace.SMEM),  # scalar bias
        ],
        out_specs=pl.BlockSpec((OUT, tile_b), lambda i: (0, i)),
        compiler_params=pltpu.CompilerParams(
            dimension_semantics=("parallel",),
            vmem_limit_bytes=32 * 1024 * 1024,
        ),
        cost_estimate=cost,
    )(xt, w_cols, bias)

    # Contiguous row slice + reshape (view) -- no extra pass over the output.
    if OUT == 1:
        return yt[0, :B].reshape(B, 1)
    return yt[:, :B].T


if __name__ == "__main__":
    key = jax.random.PRNGKey(0)
    kw, kb, kx1, kx2, kx3 = jax.random.split(key, 5)

    IN, OUT = 3, 1

    # Deterministic parameter init (mimics nn.Linear uniform(-1/sqrt(in), 1/sqrt(in)))
    bound = 1.0 / jnp.sqrt(jnp.float32(IN))
    weight = jax.random.uniform(kw, (OUT, IN), jnp.float32, -bound, bound)
    bias = jax.random.uniform(kb, (OUT,), jnp.float32, -bound, bound)

    def check(kx, B):
        x = jax.random.normal(kx, (B, IN), jnp.float32)
        y = regression_model_forward(x, weight, bias)
        jax.block_until_ready(y)
        y_ref = x @ weight.T + bias
        assert y.shape == (B, OUT), (y.shape, B, OUT)
        assert jnp.allclose(y, y_ref, atol=1e-5, rtol=1e-5)

    check(kx1, 8)       # small demo batch (matches the nn.Linear(3, 1) module)
    check(kx2, 300)     # ragged (non-multiple-of-128) batch -> small padded tail
    check(kx3, 33000)   # large enough to exercise the 2-step "parallel" grid path

    print("KERNEL_OK")
</pallas_src>

<mosaic_0001>
module attributes {stable_mosaic.version = 11 : i64} {
  func.func @linear_kernel(%arg0: i32, %arg1: memref<3x128xf32, #tpu.memory_space<vmem>>, %arg2: memref<3x1xf32, #tpu.memory_space<vmem>>, %arg3: memref<1xf32, #tpu.memory_space<smem>>, %arg4: memref<1x128xf32, #tpu.memory_space<vmem>>) attributes {dimension_semantics = [#tpu.dimension_semantics<parallel>], iteration_bounds = array<i64: 1>, scalar_prefetch = 0 : i64, scratch_operands = 0 : i64, tpu.core_type = #tpu.core_type<tc>, window_params = [{transform_indices = @transform_0, window_bounds = array<i64: 3, 128>}, {pipeline_mode = #tpu.pipeline_mode<synchronous>, transform_indices = @transform_1, window_bounds = array<i64: 3, 1>}, {transform_indices = @transform_2, window_bounds = array<i64: 1>}, {transform_indices = @transform_3, window_bounds = array<i64: 1, 128>}]} {
    %c0 = arith.constant 0 : index
    %c0_0 = arith.constant 0 : index
    %0 = vector.load %arg1[%c0, %c0_0] : memref<3x128xf32, #tpu.memory_space<vmem>>, vector<3x128xf32>
    %c0_1 = arith.constant 0 : index
    %c0_2 = arith.constant 0 : index
    %1 = vector.load %arg2[%c0_1, %c0_2] : memref<3x1xf32, #tpu.memory_space<vmem>>, vector<3x1xf32>
    %2 = vector.broadcast %1 : vector<3x1xf32> to vector<3x128xf32>
    %3 = arith.mulf %2, %0 : vector<3x128xf32>
    %cst = arith.constant dense<0.000000e+00> : vector<128xf32>
    %4 = vector.multi_reduction <add>, %3, %cst [0] : vector<3x128xf32> to vector<128xf32>
    %5 = vector.shape_cast %4 : vector<128xf32> to vector<1x128xf32>
    %c0_3 = arith.constant 0 : index
    %6 = memref.load %arg3[%c0_3] : memref<1xf32, #tpu.memory_space<smem>>
    %7 = vector.broadcast %6 : f32 to vector<1x128xf32>
    %8 = arith.addf %5, %7 : vector<1x128xf32>
    %c0_4 = arith.constant 0 : index
    %c0_5 = arith.constant 0 : index
    %9 = vector.load %arg4[%c0_4, %c0_5] : memref<1x128xf32, #tpu.memory_space<vmem>>, vector<1x128xf32>
    tpu.vector_store %arg4[%c0_4, %c0_5], %8 {strides = array<i32>} : memref<1x128xf32, #tpu.memory_space<vmem>>, vector<1x128xf32>,
    return
  }
  func.func @transform_0(%arg0: i32) -> (i32, i32) {
    %c0_i32 = arith.constant 0 : i32
    %c0_i32_0 = arith.constant 0 : i32
    return %c0_i32, %arg0 : i32, i32
  }
  func.func @transform_1(%arg0: i32) -> (i32, i32) {
    %c0_i32 = arith.constant 0 : i32
    %c0_i32_0 = arith.constant 0 : i32
    %c0_i32_1 = arith.constant 0 : i32
    return %c0_i32, %c0_i32_0 : i32, i32
  }
  func.func @transform_2(%arg0: i32) -> i32 {
    %c0_i32 = arith.constant 0 : i32
    %c0_i32_0 = arith.constant 0 : i32
    return %c0_i32 : i32
  }
  func.func @transform_3(%arg0: i32) -> (i32, i32) {
    %c0_i32 = arith.constant 0 : i32
    %c0_i32_0 = arith.constant 0 : i32
    return %c0_i32, %arg0 : i32, i32
  }
}

</mosaic_0001>

<llo_original>
// kernel: regression_model_forward.1
$region0: #{regression_model_forward.1}
  #allocation0 [shape = 'u32[]', space=smem, size = 0x4, offset = 0x4, fixed_abs, tag = 'smem constant byte address 0x4 - core index']
  #allocation1 [shape = 'u32[144,128]{1,0:T(1,128)}', space=vmem, size = 0x12000, scoped, tag = 'internal scratch']
  #allocation2 [shape = 'f32[1]{0:T(128)S(6)}', space=smem, size = 0x200, scoped, tag = 'scoped memory for regression_model_forward.1']
  %s0 = inlined_call_operand.vmem [shape: f32[3,128], index: 0, kind: input, shape index: {}]
  %s1 = inlined_call_operand.vmem [shape: f32[3,1], index: 1, kind: input, shape index: {}]
  %s2 = inlined_call_operand.<no memory space> [shape: f32[1], index: 2, kind: input, shape index: {}]
  %s3 = inlined_call_operand.vmem [shape: f32[1,128], index: 3, kind: output, shape index: {}]
  %s4 = sld [smem:[#allocation0]]
  $region22: #{regression_model_forward.1} parent=0
    _
  %s6 = ssub.s32 1, %s4
  %s7 = scalar_select 0, %s6, %s4
  %8 = sst [smem:[#allocation2]] %s2
  // Predicated region
  $region2: #{regression_model_forward.1} parent=0 // pred_check
    _
  $region3: #{regression_model_forward.1} parent=0 // pred_check_branch
    %10 = sbr.rel (0) target = $region5
  $region4: #{regression_model_forward.1} parent=0 // pred_region
    _
  $region5: #{regression_model_forward.1} parent=0 // pred_fallthru
    _
  // Predicated region
  $region6: #{regression_model_forward.1} parent=0 // pred_check
    _
  $region7: #{regression_model_forward.1} parent=0 // pred_check_branch
    %12 = sbr.rel (0) target = $region9
  $region8: #{regression_model_forward.1} parent=0 // pred_region
    _
  $region9: #{regression_model_forward.1} parent=0 // pred_fallthru
    _
  // Predicated region
  $region10: #{regression_model_forward.1} parent=0 // pred_check
    _
  $region11: #{regression_model_forward.1} parent=0 // pred_check_branch
    %14 = sbr.rel (0) target = $region13
  $region12: #{regression_model_forward.1} parent=0 // pred_region
    _
  $region13: #{regression_model_forward.1} parent=0 // pred_fallthru
    _
  %v15 = vld [vmem:[%s0] sm:$0x7]
  %v16 = vld [vmem:[%s1] sm:$0x7]
  %18 = vset.pattern.permute.xlu0 0
  %19 = vperm.xlu0 %18, %v16
  %v20 = vpop.permute.xlu0 %19
  %v22 = vmul.f32 %v20, %v15
  %vm23 = vcmask 1042432
  %v24 = vsel %vm23, %v22, 0.0
  %v25 = vrot.slane %v24, 4
  %v26 = vadd.f32 %v24, %v25
  %v27 = vrot.slane %v26, 2
  %v28 = vadd.f32 %v26, %v27
  %v29 = vrot.slane %v28, 1
  %v30 = vadd.f32 %v28, %v29
  %s31 = sld [smem:[#allocation2]]
  %v32 = vstv %s31
  %v33 = vadd.f32 %v30, %v32
  %34 = vst [vmem:[%s3] sm:$0x1] %v33
  // Predicated region
  $region14: #{regression_model_forward.1} parent=0 // pred_check
    _
  $region15: #{regression_model_forward.1} parent=0 // pred_check_branch
    %36 = sbr.rel (0) target = $region17
  $region16: #{regression_model_forward.1} parent=0 // pred_region
    _
  $region17: #{regression_model_forward.1} parent=0 // pred_fallthru
    _
  // Predicated region
  $region18: #{regression_model_forward.1} parent=0 // pred_check
    _
  $region19: #{regression_model_forward.1} parent=0 // pred_check_branch
    %38 = sbr.rel (0) target = $region21
  $region20: #{regression_model_forward.1} parent=0 // pred_region
    _
  $region21: #{regression_model_forward.1} parent=0 // pred_fallthru
    _

</llo_original>
